<compile_context>
chip_gen: v7x
topology: tpu7x:2x2x1
jax: 0.10.0
libtpu: 0.0.40
codegen_flags: <defaults>
</compile_context>

<pallas_src>
import jax
import jax.numpy as jnp
import numpy as np
from jax.experimental import pallas as pl
from jax.experimental.pallas import tpu as pltpu


# ----------------------------- Pallas kernel --------------------------------
def _rbf_tile_kernel(alpha_ref, x1_ref, x2t_ref, o_ref):
    """One (tm, tn) output tile of  alpha * exp(x1_aug @ x2_augT).

    x1_aug rows are [x1_i, -0.5|x1_i|^2, 1]; x2_augT columns are
    [x2_j, 1, -0.5|x2_j|^2], so the matmul directly yields
    -0.5 * ||x1_i - x2_j||^2 and the body is one MXU matmul + one EUP exp
    + one (free) scalar-broadcast VPU mul.
    """
    dot = jnp.dot(x1_ref[...], x2t_ref[...],
                  preferred_element_type=jnp.float32)          # (tm, tn) f32
    alpha = alpha_ref[0]                                        # SMEM scalar
    if o_ref.dtype == jnp.bfloat16:
        # Optional half-precision path (v6e/v7x bf16 EUP + half HBM writeback).
        o_ref[...] = alpha.astype(jnp.bfloat16) * jnp.exp(dot.astype(jnp.bfloat16))
    else:
        o_ref[...] = (alpha * jnp.exp(dot)).astype(o_ref.dtype)


def _round_up(x, m):
    return ((x + m - 1) // m) * m


def _pick_tile(dim, cap):
    # dim <= cap -> one block covering the whole dim ("equal full dim" escape
    # of the (8,128) rule, works for any unaligned dim).  dim > cap -> cap
    # (8/128-aligned); the last ragged block gets a masked writeback.
    return dim if dim <= cap else cap


def rbf_gram_pallas(x1s, x2s, alpha, *, tm_cap=512, tn_cap=2048,
                    out_dtype=jnp.float32):
    """x1s: (M, D), x2s: (N, D) already divided by length_scale; alpha scalar.

    Returns alpha * exp(-0.5 * ||x1_i - x2_j||^2) of shape (M, N).
    """
    M, D = x1s.shape
    N, D2 = x2s.shape
    assert D == D2
    K = D + 2

    x1s = x1s.astype(jnp.float32)
    x2s = x2s.astype(jnp.float32)

    # Fold the row norms into the contraction (K: D -> D+2).
    n1 = -0.5 * jnp.sum(x1s * x1s, axis=1, keepdims=True)               # (M,1)
    n2 = -0.5 * jnp.sum(x2s * x2s, axis=1, keepdims=True)               # (N,1)
    x1_aug = jnp.concatenate([x1s, n1, jnp.ones((M, 1), jnp.float32)], axis=1)
    x2_aug = jnp.concatenate([x2s, jnp.ones((N, 1), jnp.float32), n2], axis=1)
    x2_augT = x2_aug.T                                                  # (K, N)

    # Adaptive tiles.
    tm = _pick_tile(M, tm_cap)
    tn = _pick_tile(N, tn_cap)
    # v7x has 2 TensorCores: make sure there are >= 2 parallel grid steps when
    # the problem is splittable (no-op cost on 1-TC v5e/v6e).
    if pl.cdiv(M, tm) * pl.cdiv(N, tn) < 2:
        if M >= 16:
            tm = _round_up(pl.cdiv(M, 2), 8)      # prefer splitting M: keeps
        elif N >= 256:                            # wide lane-dense stores
            tn = _round_up(pl.cdiv(N, 2), 128)
    gm, gn = pl.cdiv(M, tm), pl.cdiv(N, tn)

    # Zero-pad only the (tiny) inputs up to the grid extent so edge-tile reads
    # stay in-bounds (padded rows/cols feed exp(0) -> finite, and their output
    # is never written back).  The OUTPUT stays exactly (M, N).
    Mi, Ni = gm * tm, gn * tn
    if Mi != M:
        x1_aug = jnp.pad(x1_aug, ((0, Mi - M), (0, 0)))
    if Ni != N:
        x2_augT = jnp.pad(x2_augT, ((0, 0), (0, Ni - N)))

    alpha_arr = jnp.reshape(alpha, (1,)).astype(jnp.float32)
    out_bytes = 2 if out_dtype == jnp.bfloat16 else 4

    return pl.pallas_call(
        _rbf_tile_kernel,
        out_shape=jax.ShapeDtypeStruct((M, N), out_dtype),
        grid_spec=pltpu.PrefetchScalarGridSpec(
            num_scalar_prefetch=0,
            grid=(gm, gn),                                    # j innermost ->
            in_specs=[                                        # X1 block stays
                pl.BlockSpec(memory_space=pltpu.MemorySpace.SMEM),  # alpha
                pl.BlockSpec((tm, K), lambda i, j: (i, 0)),   # resident over j
                pl.BlockSpec((K, tn), lambda i, j: (0, j)),   # lane-dense X2^T
            ],
            out_specs=pl.BlockSpec((tm, tn), lambda i, j: (i, j)),
        ),
        compiler_params=pltpu.CompilerParams(
            dimension_semantics=("parallel", "parallel"),
            vmem_limit_bytes=32 * 1024 * 1024),
        cost_estimate=pl.CostEstimate(
            flops=2 * M * N * K,
            transcendentals=M * N,
            bytes_accessed=out_bytes * M * N + 4 * (Mi * K + K * Ni) + 4),
    )(alpha_arr, x1_aug, x2_augT)


# --------------------------- Module equivalent -------------------------------
class KernelRes:
    """JAX port of mffusion Kernel_res (forward only)."""

    N_MC = 100

    def __init__(self, noise_exp_format=True, length_scale=1.0, scale=1.0,
                 length_scale_z=1.0, const_item=float(np.sqrt(3.0))):
        self.noise_exp_format = noise_exp_format
        self.const_item = const_item
        if noise_exp_format:
            self.length_scale = jnp.log(jnp.asarray(length_scale, jnp.float32))
            self.scale = jnp.log(jnp.asarray(scale, jnp.float32))
            self.length_scale_z = jnp.log(jnp.asarray(length_scale_z, jnp.float32))
        else:
            self.length_scale = jnp.asarray(length_scale, jnp.float32)
            self.scale = jnp.asarray(scale, jnp.float32)
            self.length_scale_z = jnp.asarray(length_scale_z, jnp.float32)
        self.b = jnp.asarray(1.0, jnp.float32)
        self.seed = 1024  # TODO(synk): torch.manual_seed RNG stream not reproducible in JAX; use jax.random with same seed value.

    def forward(self, X1, X2, l1, h1, l2, h2, out_dtype=jnp.float32):
        if self.noise_exp_format:
            length_scale = jnp.exp(self.length_scale)
            scale = jnp.exp(self.scale)
            length_scale_z = jnp.exp(self.length_scale_z)
        else:
            length_scale = self.length_scale
            scale = self.scale
            length_scale_z = self.length_scale_z

        lf1, hf1, lf2, hf2 = l1, h1, l2, h2

        # Monte-Carlo scalar (N=100 samples) -- tiny, stays in plain JAX.
        key = jax.random.PRNGKey(self.seed)
        k1, k2 = jax.random.split(key)
        z1 = jax.random.uniform(k1, (self.N_MC,), jnp.float32) * (hf1 - lf1) + lf1
        z2 = jax.random.uniform(k2, (self.N_MC,), jnp.float32) * (hf2 - lf2) + lf2
        dist_z = (z1 / length_scale_z - z2 / length_scale_z) ** 2
        z_part1 = -self.b * (z1 - hf1)
        z_part2 = -self.b * (z2 - hf2)
        z_part = jnp.exp(z_part1 + z_part2 - 0.5 * dist_z)
        z_part_mc = jnp.mean(z_part) * (hf1 - lf1) * (hf2 - lf2)

        # alpha is multiplied AFTER the exp inside the kernel (robust for any
        # sign of scale / z_part_mc, unlike a log(alpha) fold).
        alpha = scale * z_part_mc

        X1s = (X1 / length_scale).astype(jnp.float32)
        X2s = (X2 / length_scale).astype(jnp.float32)
        return rbf_gram_pallas(X1s, X2s, alpha, out_dtype=out_dtype)


# ------------------------------- Demo / test ---------------------------------
def _reference_forward(mod, X1, X2, l1, h1, l2, h2):
    """Plain-JAX reference mirroring the torch forward (same RNG as above)."""
    length_scale = jnp.exp(mod.length_scale)
    scale = jnp.exp(mod.scale)
    length_scale_z = jnp.exp(mod.length_scale_z)
    key = jax.random.PRNGKey(mod.seed)
    k1, k2 = jax.random.split(key)
    z1 = jax.random.uniform(k1, (mod.N_MC,), jnp.float32) * (h1 - l1) + l1
    z2 = jax.random.uniform(k2, (mod.N_MC,), jnp.float32) * (h2 - l2) + l2
    X1s = X1 / length_scale
    X2s = X2 / length_scale
    X1n = jnp.sum(X1s * X1s, axis=1, keepdims=True)
    X2n = jnp.sum(X2s * X2s, axis=1, keepdims=True)
    K = -2.0 * X1s @ X2s.T + X1n + X2n.T
    K = scale * jnp.exp(-0.5 * K)
    dist_z = (z1 / length_scale_z - z2 / length_scale_z) ** 2
    z_part = jnp.exp(-mod.b * (z1 - h1) - mod.b * (z2 - h2) - 0.5 * dist_z)
    z_part_mc = jnp.mean(z_part) * (h1 - l1) * (h2 - l2)
    return z_part_mc * K


if __name__ == "__main__":
    D = 8
    l1, h1, l2, h2 = 0.0, 1.0, 0.0, 1.0
    mod = KernelRes(noise_exp_format=True, length_scale=1.5, scale=0.8,
                    length_scale_z=1.2)

    # Case 1: M not a multiple of 8 -> exercises the core-split + ragged-row
    # path.  Case 2: N not a multiple of 128 -> exercises the lane-edge
    # (masked store) path.
    for (M, N) in [(200, 384), (256, 300)]:
        key = jax.random.PRNGKey(0)
        kx1, kx2 = jax.random.split(key)
        X1 = jax.random.normal(kx1, (M, D), jnp.float32)
        X2 = jax.random.normal(kx2, (N, D), jnp.float32)

        out = jax.block_until_ready(mod.forward(X1, X2, l1, h1, l2, h2))
        ref = jax.block_until_ready(_reference_forward(mod, X1, X2, l1, h1, l2, h2))
        assert out.shape == (M, N)
        np.testing.assert_allclose(np.asarray(out), np.asarray(ref),
                                   rtol=1e-5, atol=1e-5)

    print("KERNEL_OK")
</pallas_src>

<mosaic_0001>
module attributes {stable_mosaic.version = 11 : i64} {
  func.func @_rbf_tile_kernel(%arg0: i32, %arg1: i32, %arg2: memref<1xf32, #tpu.memory_space<smem>>, %arg3: memref<104x10xf32, #tpu.memory_space<vmem>>, %arg4: memref<10x384xf32, #tpu.memory_space<vmem>>, %arg5: memref<104x384xf32, #tpu.memory_space<vmem>>) attributes {dimension_semantics = [#tpu.dimension_semantics<parallel>, #tpu.dimension_semantics<parallel>], iteration_bounds = array<i64: 2, 1>, scalar_prefetch = 0 : i64, scratch_operands = 0 : i64, tpu.core_type = #tpu.core_type<tc>, window_params = [{transform_indices = @transform_0, window_bounds = array<i64: 1>}, {transform_indices = @transform_1, window_bounds = array<i64: 104, 10>}, {transform_indices = @transform_2, window_bounds = array<i64: 10, 384>}, {transform_indices = @transform_3, window_bounds = array<i64: 104, 384>}]} {
    %c0 = arith.constant 0 : index
    %c0_0 = arith.constant 0 : index
    %0 = vector.load %arg3[%c0, %c0_0] : memref<104x10xf32, #tpu.memory_space<vmem>>, vector<104x10xf32>
    %c0_1 = arith.constant 0 : index
    %c0_2 = arith.constant 0 : index
    %1 = vector.load %arg4[%c0_1, %c0_2] : memref<10x384xf32, #tpu.memory_space<vmem>>, vector<10x384xf32>
    %cst = arith.constant dense<0.000000e+00> : vector<104x384xf32>
    %2 = tpu.matmul %0, %1, %cst {dimension_numbers = #tpu.dot_dimension_numbers<[1], [0], [0], [1], [0, 0, 1, 1], [], []>} : vector<104x10xf32>, vector<10x384xf32>, vector<104x384xf32> -> vector<104x384xf32>
    %c0_3 = arith.constant 0 : index
    %3 = memref.load %arg2[%c0_3] : memref<1xf32, #tpu.memory_space<smem>>
    %4 = math.exp %2 : vector<104x384xf32>
    %5 = vector.broadcast %3 : f32 to vector<104x384xf32>
    %6 = arith.mulf %5, %4 : vector<104x384xf32>
    %c0_4 = arith.constant 0 : index
    %c0_5 = arith.constant 0 : index
    %7 = vector.load %arg5[%c0_4, %c0_5] : memref<104x384xf32, #tpu.memory_space<vmem>>, vector<104x384xf32>
    tpu.vector_store %arg5[%c0_4, %c0_5], %6 {strides = array<i32>} : memref<104x384xf32, #tpu.memory_space<vmem>>, vector<104x384xf32>,
    return
  }
  func.func @transform_0(%arg0: i32, %arg1: i32) -> i32 {
    %c0_i32 = arith.constant 0 : i32
    %c0_i32_0 = arith.constant 0 : i32
    return %c0_i32 : i32
  }
  func.func @transform_1(%arg0: i32, %arg1: i32) -> (i32, i32) {
    %c0_i32 = arith.constant 0 : i32
    %c0_i32_0 = arith.constant 0 : i32
    return %arg0, %c0_i32 : i32, i32
  }
  func.func @transform_2(%arg0: i32, %arg1: i32) -> (i32, i32) {
    %c0_i32 = arith.constant 0 : i32
    %c0_i32_0 = arith.constant 0 : i32
    return %c0_i32, %arg1 : i32, i32
  }
  func.func @transform_3(%arg0: i32, %arg1: i32) -> (i32, i32) {
    %c0_i32 = arith.constant 0 : i32
    return %arg0, %arg1 : i32, i32
  }
}

</mosaic_0001>

<llo_original>
// kernel: tpu_custom_call.1
$region0: #{tpu_custom_call.1}
  #allocation0 [shape = 'u32[]', space=smem, size = 0x4, offset = 0x4, fixed_abs, tag = 'smem constant byte address 0x4 - core index']
  #allocation1 [shape = 'u32[144,128]{1,0:T(1,128)}', space=vmem, size = 0x12000, scoped, tag = 'internal scratch']
  #allocation2 [shape = 'f32[1]{0:T(128)S(6)}', space=smem, size = 0x200, scoped, tag = 'scoped memory for tpu_custom_call.1']
  %s0 = inlined_call_operand.<no memory space> [shape: f32[1], index: 0, kind: input, shape index: {}]
  %s1 = inlined_call_operand.vmem [shape: f32[208,10], index: 1, kind: input, shape index: {}]
  %s2 = inlined_call_operand.vmem [shape: f32[10,384], index: 2, kind: input, shape index: {}]
  %s3 = inlined_call_operand.hbm [shape: f32[200,384], index: 3, kind: output, shape index: {}]
  %s4 = sld [smem:[#allocation0]]
  $region45: #{tpu_custom_call.1} parent=0
    _
  %s6 = ssub.s32 1, %s4
  %s7 = scalar_select 0, %s6, %s4
  %8 = sst [smem:[#allocation2]] %s0
  $region1: #{tpu_custom_call.1} parent=0
    #allocation3 [shape = 'u8[319488]{0}', space=vmem, size = 0x4e000, scoped, tag = 'output window, operand 0']
    #allocation4 [shape = 's32[2]{0}', space=sflag, size = 0x8, scoped, tag = 'scoped memory for tpu_custom_call.1']
    %9 = vsyncpa [#allocation4], 0
    %s10 = scalar_lea.sflag [#allocation4], 1
    %11 = vsyncpa %s10, 0
    loop: start=0, step=1, limit=4
    $region2: #{tpu_custom_call.1} parent=1 // loop_pre_header
      _
    $region3: #{tpu_custom_call.1} parent=1 // loop_header
      %s13 = sphi 0, %s17
      %p14 = scmp.ge.s32.totalorder %s13, 4
      %s20 = sphi 0, %s32
      %s21 = sphi 0, %s28
      %s22 = sphi 0, %s20
      %s23 = sphi 0, %s21
      %s24 = sphi 0, %s22
      %s25 = sphi 0, %s23
      %s33 = sphi 0, %s33
      %s35 = sphi 0, %s33
      %s36 = sphi 0, %s35
      %s50 = sphi 0, %s36
      %s56 = sphi 0, %s58
      %s59 = sphi 0, %s56
      %s60 = sphi 0, %s59
      %s76 = sphi 0, %s60
      %s82 = sphi 0, %s84
      %s85 = sphi 0, %s82
      %s86 = sphi 0, %s85
      %s102 = sphi 0, %s86
      %s110 = sphi 0, %s112
      %s113 = sphi 0, %s110
      %s114 = sphi 0, %s113
      %s130 = sphi 0, %s114
    $region4: #{tpu_custom_call.1} parent=1 // loop_header_branch
      %16 = sbr.rel (%p14) target = $region8
    $region5: #{tpu_custom_call.1} parent=1 // loop_body
      %s18 = ssub.s32 %s13, 1
      %s19 = ssub.s32 %s13, 2
      %s26 = sadd.s32 1, %s21
      %p27 = scmp.ge.s32.totalorder %s26, 1
      %s28 = scalar_select %p27, 0, %s26
      %s29 = sadd.s32 1, %s20
      %s30 = scalar_select %p27, %s29, %s20
      %p31 = scmp.ge.s32.totalorder %s30, 2
      %s32 = scalar_select %p31, 0, %s30
      %s34 = sadd.s32 %s33, 1
      %p37 = scmp.eq.s32.totalorder %s13, 1
      %p38 = scmp.ne.s32.totalorder %s33, %s35
      %p39 = scmp.eq.s32.totalorder %s13, 0
      %p40 = por %p38, %p39
      %p41 = scmp.ne.s32.totalorder %s33, %s35
      %p42 = scmp.eq.s32.totalorder %s18, 1
      %p43 = por %p41, %p42
      %p44 = scmp.ne.s32.totalorder %s35, %s36
      %p45 = scmp.eq.s32.totalorder %s18, 0
      %p46 = por %p44, %p45
      %p47 = scmp.ne.s32.totalorder %s35, %s36
      %p48 = scmp.eq.s32.totalorder %s19, 1
      %p49 = por %p47, %p48
      %p51 = scmp.ne.s32.totalorder %s36, %s50
      %p52 = scmp.eq.s32.totalorder %s19, 0
      %p53 = por %p51, %p52
      %s54 = ssub.s32 %s20, %s32
      %p55 = scmp.eq.s32.totalorder %s54, 0
      %s57 = sadd.s32 %s56, 1
      %s58 = scalar_select %p55, %s56, %s57
      %p61 = pneg %p55
      %p62 = scmp.eq.s32.totalorder %s13, 1
      %p63 = por %p61, %p62
      %p64 = scmp.ne.s32.totalorder %s56, %s59
      %p65 = scmp.eq.s32.totalorder %s13, 0
      %p66 = por %p64, %p65
      %p67 = scmp.ne.s32.totalorder %s56, %s59
      %p68 = scmp.eq.s32.totalorder %s18, 1
      %p69 = por %p67, %p68
      %p70 = scmp.ne.s32.totalorder %s59, %s60
      %p71 = scmp.eq.s32.totalorder %s18, 0
      %p72 = por %p70, %p71
      %p73 = scmp.ne.s32.totalorder %s59, %s60
      %p74 = scmp.eq.s32.totalorder %s19, 1
      %p75 = por %p73, %p74
      %p77 = scmp.ne.s32.totalorder %s60, %s76
      %p78 = scmp.eq.s32.totalorder %s19, 0
      %p79 = por %p77, %p78
      %s80 = ssub.s32 %s21, %s28
      %p81 = scmp.eq.s32.totalorder %s80, 0
      %s83 = sadd.s32 %s82, 1
      %s84 = scalar_select %p81, %s82, %s83
      %p87 = pneg %p81
      %p88 = scmp.eq.s32.totalorder %s13, 1
      %p89 = por %p87, %p88
      %p90 = scmp.ne.s32.totalorder %s82, %s85
      %p91 = scmp.eq.s32.totalorder %s13, 0
      %p92 = por %p90, %p91
      %p93 = scmp.ne.s32.totalorder %s82, %s85
      %p94 = scmp.eq.s32.totalorder %s18, 1
      %p95 = por %p93, %p94
      %p96 = scmp.ne.s32.totalorder %s85, %s86
      %p97 = scmp.eq.s32.totalorder %s18, 0
      %p98 = por %p96, %p97
      %p99 = scmp.ne.s32.totalorder %s85, %s86
      %p100 = scmp.eq.s32.totalorder %s19, 1
      %p101 = por %p99, %p100
      %p103 = scmp.ne.s32.totalorder %s86, %s102
      %p104 = scmp.eq.s32.totalorder %s19, 0
      %p105 = por %p103, %p104
      %s106 = ssub.s32 %s20, %s32
      %s107 = ssub.s32 %s21, %s28
      %s108 = sor.u32 %s106, %s107
      %p109 = scmp.eq.s32.totalorder %s108, 0
      %s111 = sadd.s32 %s110, 1
      %s112 = scalar_select %p109, %s110, %s111
      %p115 = pneg %p109
      %p116 = scmp.eq.s32.totalorder %s13, 1
      %p117 = por %p115, %p116
      %p118 = scmp.ne.s32.totalorder %s110, %s113
      %p119 = scmp.eq.s32.totalorder %s13, 0
      %p120 = por %p118, %p119
      %p121 = scmp.ne.s32.totalorder %s110, %s113
      %p122 = scmp.eq.s32.totalorder %s18, 1
      %p123 = por %p121, %p122
      %p124 = scmp.ne.s32.totalorder %s113, %s114
      %p125 = scmp.eq.s32.totalorder %s18, 0
      %p126 = por %p124, %p125
      %p127 = scmp.ne.s32.totalorder %s113, %s114
      %p128 = scmp.eq.s32.totalorder %s19, 1
      %p129 = por %p127, %p128
      %p131 = scmp.ne.s32.totalorder %s114, %s130
      %p132 = scmp.eq.s32.totalorder %s19, 0
      %p133 = por %p131, %p132
      %p134 = scmp.le.s32.totalorder 1, %s13
      %p135 = scmp.lt.s32.totalorder %s13, 3
      %p136 = pnand %p134, %p135
      %p137 = pneg %p136
      // Predicated region
      $region9: #{tpu_custom_call.1} parent=5 // pred_check
        _
      $region10: #{tpu_custom_call.1} parent=5 // pred_check_branch
        %139 = sbr.rel (%p136) target = $region12
      $region11: #{tpu_custom_call.1} parent=5 // pred_region
        %s140 = ssub.s32 %s13, 1
        // Predicated region
        $region13: #{tpu_custom_call.1} parent=11 // pred_check
          %p141 = pneg %p46
        $region14: #{tpu_custom_call.1} parent=11 // pred_check_branch
          %143 = sbr.rel (%p141) target = $region16
        $region15: #{tpu_custom_call.1} parent=11 // pred_region
          _
        $region16: #{tpu_custom_call.1} parent=11 // pred_fallthru
          _
        // Predicated region
        $region17: #{tpu_custom_call.1} parent=11 // pred_check
          %p144 = pneg %p98
        $region18: #{tpu_custom_call.1} parent=11 // pred_check_branch
          %146 = sbr.rel (%p144) target = $region20
        $region19: #{tpu_custom_call.1} parent=11 // pred_region
          %s147 = smul.u32 3, %s23
          %p148 = scmp.lt.s32.totalorder %s147, 2
          %s149 = scalar_select %p148, %s147, 2
          %s150 = smul.addr %s149, 8
          %s151 = scalar_lea.vmem %s2, %s150
          %s152 = smul.u32 3, %s23
        $region20: #{tpu_custom_call.1} parent=11 // pred_fallthru
          _
      $region12: #{tpu_custom_call.1} parent=5 // pred_fallthru
        _
      %p153 = scmp.lt.s32.totalorder %s13, 2
      // Predicated region
      $region21: #{tpu_custom_call.1} parent=5 // pred_check
        %p154 = pneg %p153
      $region22: #{tpu_custom_call.1} parent=5 // pred_check_branch
        %156 = sbr.rel (%p154) target = $region24
      $region23: #{tpu_custom_call.1} parent=5 // pred_region
        // Predicated region
        $region25: #{tpu_custom_call.1} parent=23 // pred_check
          %p157 = pneg %p66
        $region26: #{tpu_custom_call.1} parent=23 // pred_check_branch
          %159 = sbr.rel (%p157) target = $region28
        $region27: #{tpu_custom_call.1} parent=23 // pred_region
          %s160 = smul.u32 13, %s20
          %p161 = scmp.lt.s32.totalorder %s160, 25
          %s162 = scalar_select %p161, %s160, 25
          %s163 = smul.addr %s162, 8
          %s164 = scalar_lea.vmem %s1, %s163
          %s165 = smul.u32 13, %s20
        $region28: #{tpu_custom_call.1} parent=23 // pred_fallthru
          _
      $region24: #{tpu_custom_call.1} parent=5 // pred_fallthru
        _
      %p166 = scmp.le.s32.totalorder 1, %s13
      %p167 = scmp.lt.s32.totalorder %s13, 3
      %p168 = pnand %p166, %p167
      %p169 = pneg %p168
      // Predicated region
      $region29: #{tpu_custom_call.1} parent=5 // pred_check
        _
      $region30: #{tpu_custom_call.1} parent=5 // pred_check_branch
        %171 = sbr.rel (%p168) target = $region32
      $region31: #{tpu_custom_call.1} parent=5 // pred_region
        %s172 = ssub.s32 %s13, 1
        %p173 = pneg %p46
        %p174 = pneg %p43
        %s175 = smul.u32 13, %s22
        %p176 = scmp.lt.s32.totalorder %s175, 25
        %s177 = scalar_select %p176, %s175, 25
        %s178 = smul.addr %s177, 8
        %s179 = scalar_lea.vmem %s1, %s178
        %p180 = pneg %p72
        %p181 = pneg %p69
        %s182 = smul.u32 3, %s23
        %p183 = scmp.lt.s32.totalorder %s182, 2
        %s184 = scalar_select %p183, %s182, 2
        %s185 = smul.addr %s184, 8
        %s186 = scalar_lea.vmem %s2, %s185
        %p187 = pneg %p98
        %p188 = pneg %p95
        %p189 = pneg %p126
        %p190 = pneg %p123
        %s191 = sand.u32 %s113, 1
        %s192 = scalar_lea.sflag [#allocation4], %s191
        %s193 = sand.u32 %s113, 1
        %s194 = smul.addr %s193, 312
        %s195 = scalar_lea.vmem [#allocation3], %s194
        %s196 = smul.u32 13, %s22
        %p197 = scmp.lt.s32.totalorder %s196, 25
        %s198 = scalar_select %p197, %s196, 25
        %s199 = smul.addr %s198, 8
        %s200 = scalar_lea.vmem %s1, %s199
        %s201 = smul.u32 13, %s22
        %s202 = smul.u32 3, %s23
        %p203 = scmp.lt.s32.totalorder %s202, 2
        %s204 = scalar_select %p203, %s202, 2
        %s205 = smul.addr %s204, 8
        %s206 = scalar_lea.vmem %s2, %s205
        %s207 = smul.u32 3, %s23
        %s208 = smul.u32 13, %s22
        %s209 = smul.u32 3, %s23
        %s210 = ssub.s32 25, %s208
        %p211 = scmp.lt.s32.totalorder %s210, 13
        %s212 = scalar_select %p211, %s210, 13
        %s213 = smul.u32 128, %s212
        %s214 = smul.u32 %s213, 3
        %v215 = vld [vmem:[%s200] sm:$0xff]
        %v216 = vld [vmem:[%s200 + $0x8] sm:$0xff]
        %v217 = vld [vmem:[%s200 + $0x10] sm:$0xff]
        %v218 = vld [vmem:[%s200 + $0x18] sm:$0xff]
        %v219 = vld [vmem:[%s200 + $0x20] sm:$0xff]
        %v220 = vld [vmem:[%s200 + $0x28] sm:$0xff]
        %v221 = vld [vmem:[%s200 + $0x30] sm:$0xff]
        %v222 = vld [vmem:[%s200 + $0x38] sm:$0xff]
        %v223 = vld [vmem:[%s200 + $0x40] sm:$0xff]
        %v224 = vld [vmem:[%s200 + $0x48] sm:$0xff]
        %v225 = vld [vmem:[%s200 + $0x50] sm:$0xff]
        %v226 = vld [vmem:[%s200 + $0x58] sm:$0xff]
        %v227 = vld [vmem:[%s200 + $0x60] sm:$0xff]
        %v228 = vld [vmem:[%s206] sm:$0xff]
        %v229 = vld [vmem:[%s206 + $0x8] sm:$0xff]
        %v230 = vld [vmem:[%s206 + $0x10] sm:$0xff]
        %v231 = vld [vmem:[%s206 + $0x18] sm:$0x3]
        %v232 = vld [vmem:[%s206 + $0x20] sm:$0x3]
        %v233 = vld [vmem:[%s206 + $0x28] sm:$0x3]
        %vm234 = vcmask 80896
        %v236 = vsel %vm234, %v215, 0
        %v239 = vsel %vm234, %v216, 0
        %v242 = vsel %vm234, %v217, 0
        %v245 = vsel %vm234, %v218, 0
        %v248 = vsel %vm234, %v219, 0
        %v251 = vsel %vm234, %v220, 0
        %v254 = vsel %vm234, %v221, 0
        %v257 = vsel %vm234, %v222, 0
        %v260 = vsel %vm234, %v223, 0
        %v263 = vsel %vm234, %v224, 0
        %v266 = vsel %vm234, %v225, 0
        %v269 = vsel %vm234, %v226, 0
        %v272 = vsel %vm234, %v227, 0
        %vm274 = vcmask 1041408
        %v276 = vsel %vm274, %v231, 0
        %v279 = vsel %vm274, %v232, 0
        %v282 = vsel %vm274, %v233, 0
        %284 = vmatprep.subr.mxu0 %v229
        %285 = vmatpush1.msra.mxu0 %v228
        %286 = vmatprep.subr.mxu0 %v279
        %287 = vmatpush1.msra.mxu0 %v276
        %288 = vmatprep.subr.mxu0 0.0
        %289 = vmatpush1.msra.mxu0 0.0
        %290 = vmatprep.subr.mxu0 0.0
        %291 = vmatpush1.msra.mxu0 0.0
        %292 = vmatprep.subr.mxu0 0.0
        %293 = vmatpush1.msra.mxu0 0.0
        %294 = vmatprep.subr.mxu0 0.0
        %295 = vmatpush1.msra.mxu0 0.0
        %296 = vmatprep.subr.mxu0 0.0
        %297 = vmatpush1.msra.mxu0 0.0
        %298 = vmatprep.subr.mxu0 0.0
        %299 = vmatpush1.msra.mxu0 0.0
        %300 = vmatprep.subr.mxu0 0.0
        %301 = vmatpush1.msra.mxu0 0.0
        %302 = vmatprep.subr.mxu0 0.0
        %303 = vmatpush1.msra.mxu0 0.0
        %304 = vmatprep.subr.mxu0 0.0
        %305 = vmatpush1.msra.mxu0 0.0
        %306 = vmatprep.subr.mxu0 0.0
        %307 = vmatpush1.msra.mxu0 0.0
        %308 = vmatprep.subr.mxu0 0.0
        %309 = vmatpush1.msra.mxu0 0.0
        %310 = vmatprep.subr.mxu0 0.0
        %311 = vmatpush1.msra.mxu0 0.0
        %312 = vmatprep.subr.mxu0 0.0
        %313 = vmatpush1.msra.mxu0 0.0
        %314 = vmatprep.subr.mxu0 0.0
        %315 = vmatpush1.msra.mxu0 0.0
        %316 = vmatprep.subr.mxu0 0.0
        %317 = vmatpush1.msra.mxu0 0.0
        %318 = vmatprep.subr.mxu0 0.0
        %319 = vmatpush1.msra.mxu0 0.0
        %320 = vmatprep.subr.mxu0 0.0
        %321 = vmatpush1.msra.mxu0 0.0
        %322 = vmatprep.subr.mxu0 0.0
        %323 = vmatpush1.msra.mxu0 0.0
        %324 = vmatprep.subr.mxu0 0.0
        %325 = vmatpush1.msra.mxu0 0.0
        %326 = vmatprep.subr.mxu0 0.0
        %327 = vmatpush1.msra.mxu0 0.0
        %328 = vmatprep.subr.mxu0 0.0
        %329 = vmatpush1.msra.mxu0 0.0
        %330 = vmatprep.subr.mxu0 0.0
        %331 = vmatpush1.msra.mxu0 0.0
        %332 = vmatprep.subr.mxu0 0.0
        %333 = vmatpush1.msra.mxu0 0.0
        %334 = vmatprep.subr.mxu0 0.0
        %335 = vmatpush1.msra.mxu0 0.0
        %336 = vmatprep.subr.mxu0 0.0
        %337 = vmatpush1.msra.mxu0 0.0
        %338 = vmatprep.subr.mxu0 0.0
        %339 = vmatpush1.msra.mxu0 0.0
        %340 = vmatprep.subr.mxu0 0.0
        %341 = vmatpush1.msra.mxu0 0.0
        %342 = vmatprep.subr.mxu0 0.0
        %343 = vmatpush1.msra.mxu0 0.0
        %344 = vmatprep.subr.mxu0 0.0
        %345 = vmatpush1.msra.mxu0 0.0
        %346 = vmatprep.subr.mxu0 0.0
        %347 = vmatpush1.msra.mxu0 0.0
        %348 = vmatprep.mubr.f32.mxu0 0.0
        %349 = vmatmul.mubr.f32.gmra.mrb[0].mxu0 %v236
        %v350 = vpop.f32.mrb[0].mxu0
        %v351 = vadd.f32 0.0, %v350
        %v352 = vpop.f32.mrb[0].mxu0
        %v353 = vadd.f32 0.0, %v352
        %354 = vmatprep.mubr.f32.mxu0 0.0
        %355 = vmatmul.mubr.f32.gmra.mrb[0].mxu0 %v239
        %v356 = vpop.f32.mrb[0].mxu0
        %v357 = vadd.f32 0.0, %v356
        %v358 = vpop.f32.mrb[0].mxu0
        %v359 = vadd.f32 0.0, %v358
        %360 = vmatprep.mubr.f32.mxu0 0.0
        %361 = vmatmul.mubr.f32.gmra.mrb[0].mxu0 %v242
        %v362 = vpop.f32.mrb[0].mxu0
        %v363 = vadd.f32 0.0, %v362
        %v364 = vpop.f32.mrb[0].mxu0
        %v365 = vadd.f32 0.0, %v364
        %366 = vmatprep.mubr.f32.mxu0 0.0
        %367 = vmatmul.mubr.f32.gmra.mrb[0].mxu0 %v245
        %v368 = vpop.f32.mrb[0].mxu0
        %v369 = vadd.f32 0.0, %v368
        %v370 = vpop.f32.mrb[0].mxu0
        %v371 = vadd.f32 0.0, %v370
        %372 = vmatprep.mubr.f32.mxu0 0.0
        %373 = vmatmul.mubr.f32.gmra.mrb[0].mxu0 %v248
        %v374 = vpop.f32.mrb[0].mxu0
        %v375 = vadd.f32 0.0, %v374
        %v376 = vpop.f32.mrb[0].mxu0
        %v377 = vadd.f32 0.0, %v376
        %378 = vmatprep.mubr.f32.mxu0 0.0
        %379 = vmatmul.mubr.f32.gmra.mrb[0].mxu0 %v251
        %v380 = vpop.f32.mrb[0].mxu0
        %v381 = vadd.f32 0.0, %v380
        %v382 = vpop.f32.mrb[0].mxu0
        %v383 = vadd.f32 0.0, %v382
        %384 = vmatprep.mubr.f32.mxu0 0.0
        %385 = vmatmul.mubr.f32.gmra.mrb[0].mxu0 %v254
        %v386 = vpop.f32.mrb[0].mxu0
        %v387 = vadd.f32 0.0, %v386
        %v388 = vpop.f32.mrb[0].mxu0
        %v389 = vadd.f32 0.0, %v388
        %390 = vmatprep.mubr.f32.mxu0 0.0
        %391 = vmatmul.mubr.f32.gmra.mrb[0].mxu0 %v257
        %v392 = vpop.f32.mrb[0].mxu0
        %v393 = vadd.f32 0.0, %v392
        %v394 = vpop.f32.mrb[0].mxu0
        %v395 = vadd.f32 0.0, %v394
        %396 = vmatprep.mubr.f32.mxu0 0.0
        %397 = vmatmul.mubr.f32.gmra.mrb[0].mxu0 %v260
        %v398 = vpop.f32.mrb[0].mxu0
        %v399 = vadd.f32 0.0, %v398
        %v400 = vpop.f32.mrb[0].mxu0
        %v401 = vadd.f32 0.0, %v400
        %402 = vmatprep.mubr.f32.mxu0 0.0
        %403 = vmatmul.mubr.f32.gmra.mrb[0].mxu0 %v263
        %v404 = vpop.f32.mrb[0].mxu0
        %v405 = vadd.f32 0.0, %v404
        %v406 = vpop.f32.mrb[0].mxu0
        %v407 = vadd.f32 0.0, %v406
        %408 = vmatprep.mubr.f32.mxu0 0.0
        %409 = vmatmul.mubr.f32.gmra.mrb[0].mxu0 %v266
        %v410 = vpop.f32.mrb[0].mxu0
        %v411 = vadd.f32 0.0, %v410
        %v412 = vpop.f32.mrb[0].mxu0
        %v413 = vadd.f32 0.0, %v412
        %414 = vmatprep.mubr.f32.mxu0 0.0
        %415 = vmatmul.mubr.f32.gmra.mrb[0].mxu0 %v269
        %v416 = vpop.f32.mrb[0].mxu0
        %v417 = vadd.f32 0.0, %v416
        %v418 = vpop.f32.mrb[0].mxu0
        %v419 = vadd.f32 0.0, %v418
        %420 = vmatprep.mubr.f32.mxu0 0.0
        %421 = vmatmul.mubr.f32.gmra.mrb[0].mxu0 %v272
        %v422 = vpop.f32.mrb[0].mxu0
        %v423 = vadd.f32 0.0, %v422
        %v424 = vpop.f32.mrb[0].mxu0
        %v425 = vadd.f32 0.0, %v424
        %426 = vdwg.mxu0
        %427 = vmatprep.subr.mxu0 0.0
        %428 = vmatpush1.msra.mxu0 %v230
        %429 = vmatprep.subr.mxu0 0.0
        %430 = vmatpush1.msra.mxu0 %v282
        %431 = vmatprep.subr.mxu0 0.0
        %432 = vmatpush1.msra.mxu0 0.0
        %433 = vmatprep.subr.mxu0 0.0
        %434 = vmatpush1.msra.mxu0 0.0
        %435 = vmatprep.subr.mxu0 0.0
        %436 = vmatpush1.msra.mxu0 0.0
        %437 = vmatprep.subr.mxu0 0.0
        %438 = vmatpush1.msra.mxu0 0.0
        %439 = vmatprep.subr.mxu0 0.0
        %440 = vmatpush1.msra.mxu0 0.0
        %441 = vmatprep.subr.mxu0 0.0
        %442 = vmatpush1.msra.mxu0 0.0
        %443 = vmatprep.subr.mxu0 0.0
        %444 = vmatpush1.msra.mxu0 0.0
        %445 = vmatprep.subr.mxu0 0.0
        %446 = vmatpush1.msra.mxu0 0.0
        %447 = vmatprep.subr.mxu0 0.0
        %448 = vmatpush1.msra.mxu0 0.0
        %449 = vmatprep.subr.mxu0 0.0
        %450 = vmatpush1.msra.mxu0 0.0
        %451 = vmatprep.subr.mxu0 0.0
        %452 = vmatpush1.msra.mxu0 0.0
        %453 = vmatprep.subr.mxu0 0.0
        %454 = vmatpush1.msra.mxu0 0.0
        %455 = vmatprep.subr.mxu0 0.0
        %456 = vmatpush1.msra.mxu0 0.0
        %457 = vmatprep.subr.mxu0 0.0
        %458 = vmatpush1.msra.mxu0 0.0
        %459 = vmatprep.subr.mxu0 0.0
        %460 = vmatpush1.msra.mxu0 0.0
        %461 = vmatprep.subr.mxu0 0.0
        %462 = vmatpush1.msra.mxu0 0.0
        %463 = vmatprep.subr.mxu0 0.0
        %464 = vmatpush1.msra.mxu0 0.0
        %465 = vmatprep.subr.mxu0 0.0
        %466 = vmatpush1.msra.mxu0 0.0
        %467 = vmatprep.subr.mxu0 0.0
        %468 = vmatpush1.msra.mxu0 0.0
        %469 = vmatprep.subr.mxu0 0.0
        %470 = vmatpush1.msra.mxu0 0.0
        %471 = vmatprep.subr.mxu0 0.0
        %472 = vmatpush1.msra.mxu0 0.0
        %473 = vmatprep.subr.mxu0 0.0
        %474 = vmatpush1.msra.mxu0 0.0
        %475 = vmatprep.subr.mxu0 0.0
        %476 = vmatpush1.msra.mxu0 0.0
        %477 = vmatprep.subr.mxu0 0.0
        %478 = vmatpush1.msra.mxu0 0.0
        %479 = vmatprep.subr.mxu0 0.0
        %480 = vmatpush1.msra.mxu0 0.0
        %481 = vmatprep.subr.mxu0 0.0
        %482 = vmatpush1.msra.mxu0 0.0
        %483 = vmatprep.subr.mxu0 0.0
        %484 = vmatpush1.msra.mxu0 0.0
        %485 = vmatprep.subr.mxu0 0.0
        %486 = vmatpush1.msra.mxu0 0.0
        %487 = vmatprep.subr.mxu0 0.0
        %488 = vmatpush1.msra.mxu0 0.0
        %489 = vmatprep.subr.mxu0 0.0
        %490 = vmatpush1.msra.mxu0 0.0
        %491 = vmatprep.mubr.f32.mxu0 0.0
        %492 = vmatmul.mubr.f32.gmra.mrb[0].mxu0 %v236
        %v493 = vpop.f32.mrb[0].mxu0
        %v494 = vadd.f32 0.0, %v493
        %v495 = vpop.f32.mrb[0].mxu0
        %496 = vmatprep.mubr.f32.mxu0 0.0
        %497 = vmatmul.mubr.f32.gmra.mrb[0].mxu0 %v239
        %v498 = vpop.f32.mrb[0].mxu0
        %v499 = vadd.f32 0.0, %v498
        %v500 = vpop.f32.mrb[0].mxu0
        %501 = vmatprep.mubr.f32.mxu0 0.0
        %502 = vmatmul.mubr.f32.gmra.mrb[0].mxu0 %v242
        %v503 = vpop.f32.mrb[0].mxu0
        %v504 = vadd.f32 0.0, %v503
        %v505 = vpop.f32.mrb[0].mxu0
        %506 = vmatprep.mubr.f32.mxu0 0.0
        %507 = vmatmul.mubr.f32.gmra.mrb[0].mxu0 %v245
        %v508 = vpop.f32.mrb[0].mxu0
        %v509 = vadd.f32 0.0, %v508
        %v510 = vpop.f32.mrb[0].mxu0
        %511 = vmatprep.mubr.f32.mxu0 0.0
        %512 = vmatmul.mubr.f32.gmra.mrb[0].mxu0 %v248
        %v513 = vpop.f32.mrb[0].mxu0
        %v514 = vadd.f32 0.0, %v513
        %v515 = vpop.f32.mrb[0].mxu0
        %516 = vmatprep.mubr.f32.mxu0 0.0
        %517 = vmatmul.mubr.f32.gmra.mrb[0].mxu0 %v251
        %v518 = vpop.f32.mrb[0].mxu0
        %v519 = vadd.f32 0.0, %v518
        %v520 = vpop.f32.mrb[0].mxu0
        %521 = vmatprep.mubr.f32.mxu0 0.0
        %522 = vmatmul.mubr.f32.gmra.mrb[0].mxu0 %v254
        %v523 = vpop.f32.mrb[0].mxu0
        %v524 = vadd.f32 0.0, %v523
        %v525 = vpop.f32.mrb[0].mxu0
        %526 = vmatprep.mubr.f32.mxu0 0.0
        %527 = vmatmul.mubr.f32.gmra.mrb[0].mxu0 %v257
        %v528 = vpop.f32.mrb[0].mxu0
        %v529 = vadd.f32 0.0, %v528
        %v530 = vpop.f32.mrb[0].mxu0
        %531 = vmatprep.mubr.f32.mxu0 0.0
        %532 = vmatmul.mubr.f32.gmra.mrb[0].mxu0 %v260
        %v533 = vpop.f32.mrb[0].mxu0
        %v534 = vadd.f32 0.0, %v533
        %v535 = vpop.f32.mrb[0].mxu0
        %536 = vmatprep.mubr.f32.mxu0 0.0
        %537 = vmatmul.mubr.f32.gmra.mrb[0].mxu0 %v263
        %v538 = vpop.f32.mrb[0].mxu0
        %v539 = vadd.f32 0.0, %v538
        %v540 = vpop.f32.mrb[0].mxu0
        %541 = vmatprep.mubr.f32.mxu0 0.0
        %542 = vmatmul.mubr.f32.gmra.mrb[0].mxu0 %v266
        %v543 = vpop.f32.mrb[0].mxu0
        %v544 = vadd.f32 0.0, %v543
        %v545 = vpop.f32.mrb[0].mxu0
        %546 = vmatprep.mubr.f32.mxu0 0.0
        %547 = vmatmul.mubr.f32.gmra.mrb[0].mxu0 %v269
        %v548 = vpop.f32.mrb[0].mxu0
        %v549 = vadd.f32 0.0, %v548
        %v550 = vpop.f32.mrb[0].mxu0
        %551 = vmatprep.mubr.f32.mxu0 0.0
        %552 = vmatmul.mubr.f32.gmra.mrb[0].mxu0 %v272
        %v553 = vpop.f32.mrb[0].mxu0
        %v554 = vadd.f32 0.0, %v553
        %v555 = vpop.f32.mrb[0].mxu0
        %556 = vdwg.mxu0
        %s557 = sld [smem:[#allocation2]]
        %v558 = vmul.f32 %v351, 1.442695
        %v559 = vpow.pop %v558
        %v560 = vmul.f32 %v353, 1.442695
        %v561 = vpow.pop %v560
        %v562 = vmul.f32 %v494, 1.442695
        %v563 = vpow.pop %v562
        %v564 = vmul.f32 %v357, 1.442695
        %v565 = vpow.pop %v564
        %v566 = vmul.f32 %v359, 1.442695
        %v567 = vpow.pop %v566
        %v568 = vmul.f32 %v499, 1.442695
        %v569 = vpow.pop %v568
        %v570 = vmul.f32 %v363, 1.442695
        %v571 = vpow.pop %v570
        %v572 = vmul.f32 %v365, 1.442695
        %v573 = vpow.pop %v572
        %v574 = vmul.f32 %v504, 1.442695
        %v575 = vpow.pop %v574
        %v576 = vmul.f32 %v369, 1.442695
        %v577 = vpow.pop %v576
        %v578 = vmul.f32 %v371, 1.442695
        %v579 = vpow.pop %v578
        %v580 = vmul.f32 %v509, 1.442695
        %v581 = vpow.pop %v580
        %v582 = vmul.f32 %v375, 1.442695
        %v583 = vpow.pop %v582
        %v584 = vmul.f32 %v377, 1.442695
        %v585 = vpow.pop %v584
        %v586 = vmul.f32 %v514, 1.442695
        %v587 = vpow.pop %v586
        %v588 = vmul.f32 %v381, 1.442695
        %v589 = vpow.pop %v588
        %v590 = vmul.f32 %v383, 1.442695
        %v591 = vpow.pop %v590
        %v592 = vmul.f32 %v519, 1.442695
        %v593 = vpow.pop %v592
        %v594 = vmul.f32 %v387, 1.442695
        %v595 = vpow.pop %v594
        %v596 = vmul.f32 %v389, 1.442695
        %v597 = vpow.pop %v596
        %v598 = vmul.f32 %v524, 1.442695
        %v599 = vpow.pop %v598
        %v600 = vmul.f32 %v393, 1.442695
        %v601 = vpow.pop %v600
        %v602 = vmul.f32 %v395, 1.442695
        %v603 = vpow.pop %v602
        %v604 = vmul.f32 %v529, 1.442695
        %v605 = vpow.pop %v604
        %v606 = vmul.f32 %v399, 1.442695
        %v607 = vpow.pop %v606
        %v608 = vmul.f32 %v401, 1.442695
        %v609 = vpow.pop %v608
        %v610 = vmul.f32 %v534, 1.442695
        %v611 = vpow.pop %v610
        %v612 = vmul.f32 %v405, 1.442695
        %v613 = vpow.pop %v612
        %v614 = vmul.f32 %v407, 1.442695
        %v615 = vpow.pop %v614
        %v616 = vmul.f32 %v539, 1.442695
        %v617 = vpow.pop %v616
        %v618 = vmul.f32 %v411, 1.442695
        %v619 = vpow.pop %v618
        %v620 = vmul.f32 %v413, 1.442695
        %v621 = vpow.pop %v620
        %v622 = vmul.f32 %v544, 1.442695
        %v623 = vpow.pop %v622
        %v624 = vmul.f32 %v417, 1.442695
        %v625 = vpow.pop %v624
        %v626 = vmul.f32 %v419, 1.442695
        %v627 = vpow.pop %v626
        %v628 = vmul.f32 %v549, 1.442695
        %v629 = vpow.pop %v628
        %v630 = vmul.f32 %v423, 1.442695
        %v631 = vpow.pop %v630
        %v632 = vmul.f32 %v425, 1.442695
        %v633 = vpow.pop %v632
        %v634 = vmul.f32 %v554, 1.442695
        %v635 = vpow.pop %v634
        %v636 = vstv %s557
        %v637 = vmul.f32 %v636, %v559
        %v638 = vmul.f32 %v636, %v561
        %v639 = vmul.f32 %v636, %v563
        %v640 = vmul.f32 %v636, %v565
        %v641 = vmul.f32 %v636, %v567
        %v642 = vmul.f32 %v636, %v569
        %v643 = vmul.f32 %v636, %v571
        %v644 = vmul.f32 %v636, %v573
        %v645 = vmul.f32 %v636, %v575
        %v646 = vmul.f32 %v636, %v577
        %v647 = vmul.f32 %v636, %v579
        %v648 = vmul.f32 %v636, %v581
        %v649 = vmul.f32 %v636, %v583
        %v650 = vmul.f32 %v636, %v585
        %v651 = vmul.f32 %v636, %v587
        %v652 = vmul.f32 %v636, %v589
        %v653 = vmul.f32 %v636, %v591
        %v654 = vmul.f32 %v636, %v593
        %v655 = vmul.f32 %v636, %v595
        %v656 = vmul.f32 %v636, %v597
        %v657 = vmul.f32 %v636, %v599
        %v658 = vmul.f32 %v636, %v601
        %v659 = vmul.f32 %v636, %v603
        %v660 = vmul.f32 %v636, %v605
        %v661 = vmul.f32 %v636, %v607
        %v662 = vmul.f32 %v636, %v609
        %v663 = vmul.f32 %v636, %v611
        %v664 = vmul.f32 %v636, %v613
        %v665 = vmul.f32 %v636, %v615
        %v666 = vmul.f32 %v636, %v617
        %v667 = vmul.f32 %v636, %v619
        %v668 = vmul.f32 %v636, %v621
        %v669 = vmul.f32 %v636, %v623
        %v670 = vmul.f32 %v636, %v625
        %v671 = vmul.f32 %v636, %v627
        %v672 = vmul.f32 %v636, %v629
        %v673 = vmul.f32 %v636, %v631
        %v674 = vmul.f32 %v636, %v633
        %v675 = vmul.f32 %v636, %v635
        %676 = vst [vmem:[%s195] sm:$0xff] %v637
        %677 = vst [vmem:[%s195 + $0x8] sm:$0xff] %v638
        %678 = vst [vmem:[%s195 + $0x10] sm:$0xff] %v639
        %679 = vst [vmem:[%s195 + $0x18] sm:$0xff] %v640
        %680 = vst [vmem:[%s195 + $0x20] sm:$0xff] %v641
        %681 = vst [vmem:[%s195 + $0x28] sm:$0xff] %v642
        %682 = vst [vmem:[%s195 + $0x30] sm:$0xff] %v643
        %683 = vst [vmem:[%s195 + $0x38] sm:$0xff] %v644
        %684 = vst [vmem:[%s195 + $0x40] sm:$0xff] %v645
        %685 = vst [vmem:[%s195 + $0x48] sm:$0xff] %v646
        %686 = vst [vmem:[%s195 + $0x50] sm:$0xff] %v647
        %687 = vst [vmem:[%s195 + $0x58] sm:$0xff] %v648
        %688 = vst [vmem:[%s195 + $0x60] sm:$0xff] %v649
        %689 = vst [vmem:[%s195 + $0x68] sm:$0xff] %v650
        %690 = vst [vmem:[%s195 + $0x70] sm:$0xff] %v651
        %691 = vst [vmem:[%s195 + $0x78] sm:$0xff] %v652
        %692 = vst [vmem:[%s195 + $0x80] sm:$0xff] %v653
        %693 = vst [vmem:[%s195 + $0x88] sm:$0xff] %v654
        %694 = vst [vmem:[%s195 + $0x90] sm:$0xff] %v655
        %695 = vst [vmem:[%s195 + $0x98] sm:$0xff] %v656
        %696 = vst [vmem:[%s195 + $0xa0] sm:$0xff] %v657
        %697 = vst [vmem:[%s195 + $0xa8] sm:$0xff] %v658
        %698 = vst [vmem:[%s195 + $0xb0] sm:$0xff] %v659
        %699 = vst [vmem:[%s195 + $0xb8] sm:$0xff] %v660
        %700 = vst [vmem:[%s195 + $0xc0] sm:$0xff] %v661
        %701 = vst [vmem:[%s195 + $0xc8] sm:$0xff] %v662
        %702 = vst [vmem:[%s195 + $0xd0] sm:$0xff] %v663
        %703 = vst [vmem:[%s195 + $0xd8] sm:$0xff] %v664
        %704 = vst [vmem:[%s195 + $0xe0] sm:$0xff] %v665
        %705 = vst [vmem:[%s195 + $0xe8] sm:$0xff] %v666
        %706 = vst [vmem:[%s195 + $0xf0] sm:$0xff] %v667
        %707 = vst [vmem:[%s195 + $0xf8] sm:$0xff] %v668
        %708 = vst [vmem:[%s195 + $0x100] sm:$0xff] %v669
        %709 = vst [vmem:[%s195 + $0x108] sm:$0xff] %v670
        %710 = vst [vmem:[%s195 + $0x110] sm:$0xff] %v671
        %711 = vst [vmem:[%s195 + $0x118] sm:$0xff] %v672
        %712 = vst [vmem:[%s195 + $0x120] sm:$0xff] %v673
        %713 = vst [vmem:[%s195 + $0x128] sm:$0xff] %v674
        %714 = vst [vmem:[%s195 + $0x130] sm:$0xff] %v675
        %s715 = sand.u32 %s113, 1
        %s716 = scalar_lea.sflag [#allocation4], %s715
        %s717 = sand.u32 %s113, 1
        %s718 = smul.addr %s717, 312
        %s719 = scalar_lea.vmem [#allocation3], %s718
        // Predicated region
        $region33: #{tpu_custom_call.1} parent=31 // pred_check
          %p720 = pneg %p123
        $region34: #{tpu_custom_call.1} parent=31 // pred_check_branch
          %722 = sbr.rel (%p720) target = $region36
        $region35: #{tpu_custom_call.1} parent=31 // pred_region
          %s723 = smul.u32 13, %s22
          %s724 = smul.u32 3, %s23
          %s725 = ssub.s32 25, %s723
          %p726 = scmp.lt.s32.totalorder %s725, 13
          %s727 = scalar_select %p726, %s725, 13
          %s728 = smul.u32 128, %s727
          %s729 = smul.u32 %s728, 3
          %s731 = ssub.s32 4992, %s729
          %732 = vsyncadd %s716, %s731
          %p733 = scmp.ne.s32.totalorder 0, %s729
          %s734 = smul.addr %s723, 3
          %s735 = sadd.s32 %s724, %s734
          %s736 = smul.addr %s735, 128
          %s737 = scalar_lea.hbm %s3, %s736
          %s738 = smul.u32 24, %s727
          %s739 = sshll.u32 %s719, 4
          %s740 = int_to_ptr.vmem [resolvable:$true] %s739
          %s741 = sshll.u32 %s738, 4
          %745 = dma.vmem_to_hbm [thread:$0]  (%p733), %s740, %s741, %s737, %s716, 384, 384, 24
        $region36: #{tpu_custom_call.1} parent=31 // pred_fallthru
          _
      $region32: #{tpu_custom_call.1} parent=5 // pred_fallthru
        _
      %p746 = scmp.le.s32.totalorder 2, %s13
      // Predicated region
      $region37: #{tpu_custom_call.1} parent=5 // pred_check
        %p747 = pneg %p746
      $region38: #{tpu_custom_call.1} parent=5 // pred_check_branch
        %749 = sbr.rel (%p747) target = $region40
      $region39: #{tpu_custom_call.1} parent=5 // pred_region
        %s750 = ssub.s32 %s13, 2
        // Predicated region
        $region41: #{tpu_custom_call.1} parent=39 // pred_check
          %p751 = pneg %p129
        $region42: #{tpu_custom_call.1} parent=39 // pred_check_branch
          %753 = sbr.rel (%p751) target = $region44
        $region43: #{tpu_custom_call.1} parent=39 // pred_region
          %s754 = sand.u32 %s114, 1
          %s755 = scalar_lea.sflag [#allocation4], %s754
          %s756 = sand.u32 %s114, 1
          %s757 = smul.addr %s756, 312
          %s758 = scalar_lea.vmem [#allocation3], %s757
          %759 = dma.done %s755, 4992
        $region44: #{tpu_custom_call.1} parent=39 // pred_fallthru
          _
      $region40: #{tpu_custom_call.1} parent=5 // pred_fallthru
        _
    $region6: #{tpu_custom_call.1} parent=1 // loop_footer
      %s17 = sadd.s32 1, %s13
    $region7: #{tpu_custom_call.1} parent=1 // loop_footer_branch
      %12 = sbr.rel target = $region3
    $region8: #{tpu_custom_call.1} parent=1 // loop_exit
      _
    %760 = vsyncpa [#allocation4], 1
    %s761 = scalar_lea.sflag [#allocation4], 1
    %762 = vsyncpa %s761, 1

</llo_original>
